<compile_context>
chip_gen: v5e
topology: v5e:2x2
jax: 0.10.0
libtpu: 0.0.40
codegen_flags: <defaults>
</compile_context>

<pallas_src>
import functools

import jax
import jax.numpy as jnp
from jax.experimental import pallas as pl
from jax.experimental.pallas import tpu as pltpu


def ffn_kernel(x_ref, w1_ref, b1_ref, w2_ref, b2_ref, o_ref, acc_ref,
               *, compute_dtype):
    # grid = (grid_m ["parallel"], grid_k ["arbitrary"])
    #   x_ref  : (tm, d_model)       input dtype (cast in-kernel)
    #   w1_ref : (d_model, tf)       weight dtype (cast in-kernel)
    #   b1_ref : (1, tf)
    #   w2_ref : (tf, d_model)
    #   b2_ref : (1, d_model)
    #   o_ref  : (tm, d_model)       output dtype, written at the last k step
    #   acc_ref: (tm, d_model) f32   accumulator scratch, persists across k
    k = pl.program_id(1)

    @pl.when(k == 0)
    def _init():
        # Fold the second bias into the accumulator init (added exactly once).
        acc_ref[...] = jnp.broadcast_to(
            b2_ref[...].astype(jnp.float32), acc_ref.shape)

    x = x_ref[...].astype(compute_dtype)
    w1 = w1_ref[...].astype(compute_dtype)
    h = jnp.dot(x, w1, preferred_element_type=jnp.float32)
    # Bias + ReLU in f32, fused with the downcast of h (single pass).
    # TODO(synk): training-mode dropout (stateful PRNG mask) not implemented;
    #             eval-mode dropout is the identity, which is what we compute.
    h = jnp.maximum(h + b1_ref[...].astype(jnp.float32),
                    0.0).astype(compute_dtype)
    w2 = w2_ref[...].astype(compute_dtype)
    acc_ref[...] += jnp.dot(h, w2, preferred_element_type=jnp.float32)

    @pl.when(k == pl.num_programs(1) - 1)
    def _store():
        o_ref[...] = acc_ref[...].astype(o_ref.dtype)


def _round_up(x, m):
    return (x + m - 1) // m * m


def _pick_dff_chunk(d_ff, target):
    """Largest 128-lane-aligned divisor of d_ff that is <= target.

    Falls back to the full d_ff (no chunking) if no aligned divisor exists,
    so correctness never depends on a ragged reduction chunk."""
    if d_ff <= target:
        return d_ff
    tf = (target // 128) * 128
    while tf >= 128:
        if d_ff % tf == 0:
            return tf
        tf -= 128
    return d_ff


def positionwise_ffn(x, w1, b1, w2, b2, *, tm=512, max_tf=2048,
                     compute_dtype=jnp.bfloat16):
    """y = relu(x @ w1 + b1) @ w2 + b2 (eval-mode dropout = identity).

    x: [B, S, d_model]; w1: [d_model, d_ff]; b1: [d_ff];
    w2: [d_ff, d_model]; b2: [d_model].  Returns [B, S, d_model].

    Operands are passed in their native dtype and cast per-tile inside the
    kernel (no per-call wrapper astype passes).  Callers targeting the bf16
    MXU fast path should pre-cast the weights to bf16 once at init to also
    halve the streamed-weight HBM traffic.
    """
    B, S, d_model = x.shape
    d_ff = w1.shape[1]
    M = B * S
    out_dtype = x.dtype

    x_item = jnp.dtype(x.dtype).itemsize
    w_item = jnp.dtype(w1.dtype).itemsize
    c_item = jnp.dtype(compute_dtype).itemsize
    o_item = jnp.dtype(out_dtype).itemsize

    # Token tile: multiple of the input-dtype sublane pack, never larger than
    # (rounded-up) M.  The ragged last tile is handled by Pallas writeback
    # masking (rows are independent; OOB rows are computed but never stored).
    sub = 8 if x_item == 4 else 16
    tm = int(min(_round_up(tm, sub), _round_up(M, sub)))
    grid_m = int(pl.cdiv(M, tm))

    # d_ff reduction chunk: stream W1/W2 so the f32 intermediate and the
    # weight working set fit per-TensorCore VMEM (v7x: 64 MiB per TC).
    tf = int(_pick_dff_chunk(d_ff, max_tf))
    grid_k = d_ff // tf

    x2 = x.reshape(M, d_model)
    b1r = b1.reshape(1, d_ff)
    b2r = b2.reshape(1, d_model)

    # ---- VMEM budget (per TensorCore), clamped to the actual hardware. ----
    buf = (
        2 * tm * d_model * x_item                       # x tile (double buf)
        + 2 * d_model * tf * w_item                     # W1 chunk (double buf)
        + 2 * tf * d_model * w_item                     # W2 chunk (double buf)
        + 2 * tf * jnp.dtype(b1.dtype).itemsize         # b1 chunk
        + 2 * d_model * jnp.dtype(b2.dtype).itemsize    # b2
        + 2 * tm * d_model * o_item                     # out tile
        + tm * d_model * 4                              # f32 accumulator
        + tm * tf * (4 + c_item)                        # f32 h + compute copy
        + (tm * d_model + 2 * d_model * tf) * c_item    # in-kernel casts
    )
    vmem_bytes = int(1.3 * buf) + (2 << 20)
    try:
        hw_vmem = int(pltpu.get_tpu_info().vmem_capacity_bytes)
    except Exception:
        hw_vmem = 64 << 20  # conservative: v7x per-TensorCore VMEM
    vmem_bytes = max(16 << 20, min(vmem_bytes, hw_vmem - (8 << 20)))

    # Advisory cost for XLA's scheduler around the custom call.
    cost = pl.CostEstimate(
        flops=4 * M * d_model * d_ff,
        transcendentals=0,
        bytes_accessed=(M * d_model * (x_item + o_item)
                        + grid_m * 2 * d_model * d_ff * w_item
                        + (d_ff + d_model) * 4),
    )

    kernel = functools.partial(ffn_kernel, compute_dtype=compute_dtype)

    out = pl.pallas_call(
        kernel,
        out_shape=jax.ShapeDtypeStruct((M, d_model), out_dtype),
        grid_spec=pltpu.PrefetchScalarGridSpec(
            num_scalar_prefetch=0,
            grid=(grid_m, grid_k),
            in_specs=[
                pl.BlockSpec((tm, d_model), lambda i, k: (i, 0)),   # x tile
                pl.BlockSpec((d_model, tf), lambda i, k: (0, k)),   # W1 chunk
                pl.BlockSpec((1, tf), lambda i, k: (0, k)),         # b1 chunk
                pl.BlockSpec((tf, d_model), lambda i, k: (k, 0)),   # W2 chunk
                pl.BlockSpec((1, d_model), lambda i, k: (0, 0)),    # b2
            ],
            out_specs=pl.BlockSpec((tm, d_model), lambda i, k: (i, 0)),
            scratch_shapes=[pltpu.VMEM((tm, d_model), jnp.float32)],
        ),
        compiler_params=pltpu.CompilerParams(
            dimension_semantics=("parallel", "arbitrary"),
            vmem_limit_bytes=int(vmem_bytes),
        ),
        cost_estimate=cost,
    )(x2, w1, b1r, w2, b2r)

    return out.reshape(B, S, d_model)


if __name__ == "__main__":
    key = jax.random.PRNGKey(0)
    kx, kw1, kb1, kw2, kb2, kx2 = jax.random.split(key, 6)

    # ---- Test 1/2/3: small shapes consistent with the module's forward. ----
    B, S, d_model, d_ff = 2, 8, 32, 64
    x = jax.random.normal(kx, (B, S, d_model), dtype=jnp.float32)
    # nn.Linear weights stored as [in_features, out_features].
    w1 = jax.random.normal(kw1, (d_model, d_ff), dtype=jnp.float32) * 0.05
    b1 = jax.random.normal(kb1, (d_ff,), dtype=jnp.float32) * 0.05
    w2 = jax.random.normal(kw2, (d_ff, d_model), dtype=jnp.float32) * 0.05
    b2 = jax.random.normal(kb2, (d_model,), dtype=jnp.float32) * 0.05

    ref = jnp.maximum(x @ w1 + b1, 0.0) @ w2 + b2   # eval dropout = identity

    # 1) f32 compute path: tight tolerance vs. the f32 reference.
    y32 = positionwise_ffn(x, w1, b1, w2, b2, compute_dtype=jnp.float32)
    jax.block_until_ready(y32)
    assert y32.shape == (B, S, d_model)
    assert jnp.allclose(y32, ref, atol=1e-5, rtol=1e-5)

    # 2) bf16-operand MXU fast path (default): f32 accumulation, loose tol.
    ybf = positionwise_ffn(x, w1, b1, w2, b2)
    jax.block_until_ready(ybf)
    assert ybf.shape == (B, S, d_model)
    assert jnp.allclose(ybf, ref, atol=2e-2, rtol=2e-2)

    # 3) Non-divisible token count exercises the ragged-tile (masked) path.
    xr = jax.random.normal(key, (1, 7, d_model), dtype=jnp.float32)
    refr = jnp.maximum(xr @ w1 + b1, 0.0) @ w2 + b2
    yr = positionwise_ffn(xr, w1, b1, w2, b2, compute_dtype=jnp.float32)
    jax.block_until_ready(yr)
    assert yr.shape == (1, 7, d_model)
    assert jnp.allclose(yr, refr, atol=1e-5, rtol=1e-5)

    # 4) d_ff-chunked accumulator path (grid_k > 1), lane-aligned dims.
    Bc, Sc, dmc, dfc = 2, 24, 128, 256
    xc = jax.random.normal(kx2, (Bc, Sc, dmc), dtype=jnp.float32)
    w1c = jax.random.normal(kw1, (dmc, dfc), dtype=jnp.float32) * 0.05
    b1c = jax.random.normal(kb1, (dfc,), dtype=jnp.float32) * 0.05
    w2c = jax.random.normal(kw2, (dfc, dmc), dtype=jnp.float32) * 0.05
    b2c = jax.random.normal(kb2, (dmc,), dtype=jnp.float32) * 0.05
    refc = jnp.maximum(xc @ w1c + b1c, 0.0) @ w2c + b2c
    yc = positionwise_ffn(xc, w1c, b1c, w2c, b2c, max_tf=128,
                          compute_dtype=jnp.float32)
    jax.block_until_ready(yc)
    assert yc.shape == (Bc, Sc, dmc)
    assert jnp.allclose(yc, refc, atol=1e-4, rtol=1e-4)

    print("KERNEL_OK")
</pallas_src>

<mosaic_0001>
module attributes {stable_mosaic.version = 11 : i64} {
  func.func @ffn_kernel(%arg0: i32, %arg1: i32, %arg2: memref<16x32xf32, #tpu.memory_space<vmem>>, %arg3: memref<32x64xf32, #tpu.memory_space<vmem>>, %arg4: memref<1x64xf32, #tpu.memory_space<vmem>>, %arg5: memref<64x32xf32, #tpu.memory_space<vmem>>, %arg6: memref<1x32xf32, #tpu.memory_space<vmem>>, %arg7: memref<16x32xf32, #tpu.memory_space<vmem>>, %arg8: memref<16x32xf32, #tpu.memory_space<vmem>>) attributes {dimension_semantics = [#tpu.dimension_semantics<parallel>, #tpu.dimension_semantics<arbitrary>], iteration_bounds = array<i64: 1, 1>, scalar_prefetch = 0 : i64, scratch_operands = 1 : i64, tpu.core_type = #tpu.core_type<tc>, window_params = [{transform_indices = @transform_0, window_bounds = array<i64: 16, 32>}, {transform_indices = @transform_1, window_bounds = array<i64: 32, 64>}, {transform_indices = @transform_2, window_bounds = array<i64: 1, 64>}, {transform_indices = @transform_3, window_bounds = array<i64: 64, 32>}, {pipeline_mode = #tpu.pipeline_mode<synchronous>, transform_indices = @transform_4, window_bounds = array<i64: 1, 32>}, {transform_indices = @transform_5, window_bounds = array<i64: 16, 32>}]} {
    %c0_i32 = arith.constant 0 : i32
    %0 = arith.cmpi eq, %arg1, %c0_i32 : i32
    %1 = arith.extui %0 : i1 to i32
    %c0_i32_0 = arith.constant 0 : i32
    %2 = arith.cmpi ne, %1, %c0_i32_0 : i32
    scf.if %2 {
      %c0_16 = arith.constant 0 : index
      %c0_17 = arith.constant 0 : index
      %19 = vector.load %arg6[%c0_16, %c0_17] : memref<1x32xf32, #tpu.memory_space<vmem>>, vector<1x32xf32>
      %20 = vector.shape_cast %19 : vector<1x32xf32> to vector<1x32xf32>
      %21 = vector.broadcast %20 : vector<1x32xf32> to vector<16x32xf32>
      %c0_18 = arith.constant 0 : index
      %c0_19 = arith.constant 0 : index
      %22 = vector.load %arg8[%c0_18, %c0_19] : memref<16x32xf32, #tpu.memory_space<vmem>>, vector<16x32xf32>
      tpu.vector_store %arg8[%c0_18, %c0_19], %21 {strides = array<i32>} : memref<16x32xf32, #tpu.memory_space<vmem>>, vector<16x32xf32>,
    } else {
    }
    %c0 = arith.constant 0 : index
    %c0_1 = arith.constant 0 : index
    %3 = vector.load %arg2[%c0, %c0_1] : memref<16x32xf32, #tpu.memory_space<vmem>>, vector<16x32xf32>
    %c0_2 = arith.constant 0 : index
    %c0_3 = arith.constant 0 : index
    %4 = vector.load %arg3[%c0_2, %c0_3] : memref<32x64xf32, #tpu.memory_space<vmem>>, vector<32x64xf32>
    %cst = arith.constant dense<0.000000e+00> : vector<16x64xf32>
    %5 = tpu.matmul %3, %4, %cst {dimension_numbers = #tpu.dot_dimension_numbers<[1], [0], [0], [1], [0, 0, 1, 1], [], []>} : vector<16x32xf32>, vector<32x64xf32>, vector<16x64xf32> -> vector<16x64xf32>
    %c0_4 = arith.constant 0 : index
    %c0_5 = arith.constant 0 : index
    %6 = vector.load %arg4[%c0_4, %c0_5] : memref<1x64xf32, #tpu.memory_space<vmem>>, vector<1x64xf32>
    %7 = vector.broadcast %6 : vector<1x64xf32> to vector<16x64xf32>
    %8 = arith.addf %5, %7 : vector<16x64xf32>
    %cst_6 = arith.constant 0.000000e+00 : f32
    %9 = vector.broadcast %cst_6 : f32 to vector<16x64xf32>
    %10 = arith.maximumf %8, %9 : vector<16x64xf32>
    %c0_7 = arith.constant 0 : index
    %c0_8 = arith.constant 0 : index
    %11 = vector.load %arg5[%c0_7, %c0_8] : memref<64x32xf32, #tpu.memory_space<vmem>>, vector<64x32xf32>
    %c0_9 = arith.constant 0 : index
    %c0_10 = arith.constant 0 : index
    %12 = vector.load %arg8[%c0_9, %c0_10] : memref<16x32xf32, #tpu.memory_space<vmem>>, vector<16x32xf32>
    %cst_11 = arith.constant dense<0.000000e+00> : vector<16x32xf32>
    %13 = tpu.matmul %10, %11, %cst_11 {dimension_numbers = #tpu.dot_dimension_numbers<[1], [0], [0], [1], [0, 0, 1, 1], [], []>} : vector<16x64xf32>, vector<64x32xf32>, vector<16x32xf32> -> vector<16x32xf32>
    %14 = arith.addf %12, %13 : vector<16x32xf32>
    %c0_12 = arith.constant 0 : index
    %c0_13 = arith.constant 0 : index
    %15 = vector.load %arg8[%c0_12, %c0_13] : memref<16x32xf32, #tpu.memory_space<vmem>>, vector<16x32xf32>
    tpu.vector_store %arg8[%c0_12, %c0_13], %14 {strides = array<i32>} : memref<16x32xf32, #tpu.memory_space<vmem>>, vector<16x32xf32>,
    %c0_i32_14 = arith.constant 0 : i32
    %16 = arith.cmpi eq, %arg1, %c0_i32_14 : i32
    %17 = arith.extui %16 : i1 to i32
    %c0_i32_15 = arith.constant 0 : i32
    %18 = arith.cmpi ne, %17, %c0_i32_15 : i32
    scf.if %18 {
      %c0_16 = arith.constant 0 : index
      %c0_17 = arith.constant 0 : index
      %19 = vector.load %arg8[%c0_16, %c0_17] : memref<16x32xf32, #tpu.memory_space<vmem>>, vector<16x32xf32>
      %c0_18 = arith.constant 0 : index
      %c0_19 = arith.constant 0 : index
      %20 = vector.load %arg7[%c0_18, %c0_19] : memref<16x32xf32, #tpu.memory_space<vmem>>, vector<16x32xf32>
      tpu.vector_store %arg7[%c0_18, %c0_19], %19 {strides = array<i32>} : memref<16x32xf32, #tpu.memory_space<vmem>>, vector<16x32xf32>,
    } else {
    }
    return
  }
  func.func @transform_0(%arg0: i32, %arg1: i32) -> (i32, i32) {
    %c0_i32 = arith.constant 0 : i32
    %c0_i32_0 = arith.constant 0 : i32
    return %arg0, %c0_i32 : i32, i32
  }
  func.func @transform_1(%arg0: i32, %arg1: i32) -> (i32, i32) {
    %c0_i32 = arith.constant 0 : i32
    %c0_i32_0 = arith.constant 0 : i32
    return %c0_i32, %arg1 : i32, i32
  }
  func.func @transform_2(%arg0: i32, %arg1: i32) -> (i32, i32) {
    %c0_i32 = arith.constant 0 : i32
    %c0_i32_0 = arith.constant 0 : i32
    return %c0_i32, %arg1 : i32, i32
  }
  func.func @transform_3(%arg0: i32, %arg1: i32) -> (i32, i32) {
    %c0_i32 = arith.constant 0 : i32
    %c0_i32_0 = arith.constant 0 : i32
    return %arg1, %c0_i32 : i32, i32
  }
  func.func @transform_4(%arg0: i32, %arg1: i32) -> (i32, i32) {
    %c0_i32 = arith.constant 0 : i32
    %c0_i32_0 = arith.constant 0 : i32
    %c0_i32_1 = arith.constant 0 : i32
    return %c0_i32, %c0_i32_0 : i32, i32
  }
  func.func @transform_5(%arg0: i32, %arg1: i32) -> (i32, i32) {
    %c0_i32 = arith.constant 0 : i32
    %c0_i32_0 = arith.constant 0 : i32
    return %arg0, %c0_i32 : i32, i32
  }
}

</mosaic_0001>

<llo_original>
// kernel: tpu_custom_call.1
$region0: #{tpu_custom_call.1}
  #allocation0 [shape = 'u32[]', space=smem, size = 0x4, offset = 0x4, fixed_abs, tag = 'smem constant byte address 0x4 - core index']
  #allocation1 [shape = 'u32[72,128]{1,0:T(1,128)}', space=vmem, size = 0x9000, scoped, tag = 'internal scratch']
  #allocation2 [shape = 'f32[16,32]{1,0:T(8,128)}', space=vmem, size = 0x2000, scoped, tag = 'scratch operand']
  %s0 = inlined_call_operand.vmem [shape: f32[16,32], index: 0, kind: input, shape index: {}]
  %s1 = inlined_call_operand.vmem [shape: f32[32,64], index: 1, kind: input, shape index: {}]
  %s2 = inlined_call_operand.vmem [shape: f32[1,64], index: 2, kind: input, shape index: {}]
  %s3 = inlined_call_operand.vmem [shape: f32[64,32], index: 3, kind: input, shape index: {}]
  %s4 = inlined_call_operand.vmem [shape: f32[1,32], index: 4, kind: input, shape index: {}]
  %s5 = inlined_call_operand.hbm [shape: f32[16,32], index: 5, kind: output, shape index: {}]
  %s6 = sld [smem:[#allocation0]]
  $region38: #{tpu_custom_call.1} parent=0
    _
  %s8 = ssub.s32 1, %s6
  %s9 = scalar_select 0, %s8, %s6
  $region1: #{tpu_custom_call.1} parent=0
    #allocation3 [shape = 'u8[8192]{0}', space=vmem, size = 0x2000, scoped, tag = 'output window, operand 0, single buffered']
    #allocation4 [shape = 's32[1]{0}', space=sflag, size = 0x4, scoped, tag = 'scoped memory for tpu_custom_call.1']
    %10 = vsyncpa [#allocation4], 0
    // Predicated region
    $region2: #{tpu_custom_call.1} parent=1 // pred_check
      _
    $region3: #{tpu_custom_call.1} parent=1 // pred_check_branch
      %12 = sbr.rel (0) target = $region5
    $region4: #{tpu_custom_call.1} parent=1 // pred_region
      _
    $region5: #{tpu_custom_call.1} parent=1 // pred_fallthru
      _
    // Predicated region
    $region6: #{tpu_custom_call.1} parent=1 // pred_check
      _
    $region7: #{tpu_custom_call.1} parent=1 // pred_check_branch
      %14 = sbr.rel (0) target = $region9
    $region8: #{tpu_custom_call.1} parent=1 // pred_region
      _
    $region9: #{tpu_custom_call.1} parent=1 // pred_fallthru
      _
    // Predicated region
    $region10: #{tpu_custom_call.1} parent=1 // pred_check
      _
    $region11: #{tpu_custom_call.1} parent=1 // pred_check_branch
      %16 = sbr.rel (0) target = $region13
    $region12: #{tpu_custom_call.1} parent=1 // pred_region
      _
    $region13: #{tpu_custom_call.1} parent=1 // pred_fallthru
      _
    // Predicated region
    $region14: #{tpu_custom_call.1} parent=1 // pred_check
      _
    $region15: #{tpu_custom_call.1} parent=1 // pred_check_branch
      %18 = sbr.rel (0) target = $region17
    $region16: #{tpu_custom_call.1} parent=1 // pred_region
      _
    $region17: #{tpu_custom_call.1} parent=1 // pred_fallthru
      _
    // Predicated region
    $region18: #{tpu_custom_call.1} parent=1 // pred_check
      _
    $region19: #{tpu_custom_call.1} parent=1 // pred_check_branch
      %20 = sbr.rel (0) target = $region21
    $region20: #{tpu_custom_call.1} parent=1 // pred_region
      _
    $region21: #{tpu_custom_call.1} parent=1 // pred_fallthru
      _
    %p21 = scmp.eq.s32.totalorder 0, 0
    // Predicated region
    $region22: #{tpu_custom_call.1} parent=1 // pred_check
      %p22 = pneg %p21
    $region23: #{tpu_custom_call.1} parent=1 // pred_check_branch
      %24 = sbr.rel (%p22) target = $region25
    $region24: #{tpu_custom_call.1} parent=1 // pred_region
      %v25 = vld [vmem:[%s4] sm:$0x1]
      %v27 = vperm.slane %v25, 0
      %vm29 = vcmask 261120
      %30 = vst.msk [vmem:[#allocation2] sm:$0xff] %vm29, %v27
      %31 = vst.msk [vmem:[#allocation2 + $0x8] sm:$0xff] %vm29, %v27
    $region25: #{tpu_custom_call.1} parent=1 // pred_fallthru
      _
    %v32 = vld [vmem:[%s0] sm:$0xff]
    %v33 = vld [vmem:[%s0 + $0x8] sm:$0xff]
    %v34 = vld [vmem:[%s1] sm:$0xff]
    %v35 = vld [vmem:[%s1 + $0x8] sm:$0xff]
    %v36 = vld [vmem:[%s1 + $0x10] sm:$0xff]
    %v37 = vld [vmem:[%s1 + $0x18] sm:$0xff]
    %v38 = vld [vmem:[%s2] sm:$0x1]
    %v40 = vperm.slane %v38, 0
    %vm42 = vcmask 261120
    %v44 = vsel %vm42, %v32, 0
    %v47 = vsel %vm42, %v33, 0
    %49 = vmatpush.msra.mxu0 0.0
    %50 = vmatpush.msra.mxu0 0.0
    %51 = vmatpush.msra.mxu0 0.0
    %52 = vmatpush.msra.mxu0 0.0
    %53 = vmatpush.msra.mxu0 0.0
    %54 = vmatpush.msra.mxu0 0.0
    %55 = vmatpush.msra.mxu0 0.0
    %56 = vmatpush.msra.mxu0 0.0
    %57 = vmatpush.msra.mxu0 0.0
    %58 = vmatpush.msra.mxu0 0.0
    %59 = vmatpush.msra.mxu0 0.0
    %60 = vmatpush.msra.mxu0 0.0
    %61 = vmatpush.msra.mxu0 %v37
    %62 = vmatpush.msra.mxu0 %v36
    %63 = vmatpush.msra.mxu0 %v35
    %64 = vmatpush.msra.mxu0 %v34
    %65 = vmatmul.f32.gmra.mxu0 %v44
    %v66 = vpop.f32.mrf.mxu0
    %v67 = vadd.f32 %v40, %v66
    %68 = vmatmul.f32.gmra.mxu0 %v47
    %v69 = vpop.f32.mrf.mxu0
    %v70 = vadd.f32 %v40, %v69
    %71 = vdwg.mxu0
    %v72 = vmax.f32 %v67, 0.0
    %v73 = vmax.f32 %v70, 0.0
    %v74 = vld [vmem:[%s3] sm:$0xff]
    %v75 = vld [vmem:[%s3 + $0x8] sm:$0xff]
    %v76 = vld [vmem:[%s3 + $0x10] sm:$0xff]
    %v77 = vld [vmem:[%s3 + $0x18] sm:$0xff]
    %v78 = vld [vmem:[%s3 + $0x20] sm:$0xff]
    %v79 = vld [vmem:[%s3 + $0x28] sm:$0xff]
    %v80 = vld [vmem:[%s3 + $0x30] sm:$0xff]
    %v81 = vld [vmem:[%s3 + $0x38] sm:$0xff]
    %v82 = vld [vmem:[#allocation2] sm:$0xff]
    %v83 = vld [vmem:[#allocation2 + $0x8] sm:$0xff]
    %vm84 = vcmask 523264
    %v86 = vsel %vm84, %v72, 0
    %v89 = vsel %vm84, %v73, 0
    %91 = vmatpush.msra.mxu0 0.0
    %92 = vmatpush.msra.mxu0 0.0
    %93 = vmatpush.msra.mxu0 0.0
    %94 = vmatpush.msra.mxu0 0.0
    %95 = vmatpush.msra.mxu0 0.0
    %96 = vmatpush.msra.mxu0 0.0
    %97 = vmatpush.msra.mxu0 0.0
    %98 = vmatpush.msra.mxu0 0.0
    %99 = vmatpush.msra.mxu0 %v81
    %100 = vmatpush.msra.mxu0 %v80
    %101 = vmatpush.msra.mxu0 %v79
    %102 = vmatpush.msra.mxu0 %v78
    %103 = vmatpush.msra.mxu0 %v77
    %104 = vmatpush.msra.mxu0 %v76
    %105 = vmatpush.msra.mxu0 %v75
    %106 = vmatpush.msra.mxu0 %v74
    %107 = vmatmul.f32.gmra.mxu0 %v86
    %v108 = vpop.f32.mrf.mxu0
    %v109 = vadd.f32 0.0, %v108
    %110 = vmatmul.f32.gmra.mxu0 %v89
    %v111 = vpop.f32.mrf.mxu0
    %v112 = vadd.f32 0.0, %v111
    %113 = vdwg.mxu0
    %v114 = vadd.f32 %v82, %v109
    %v115 = vadd.f32 %v83, %v112
    %116 = vst.msk [vmem:[#allocation2] sm:$0xff] %vm42, %v114
    %117 = vst.msk [vmem:[#allocation2 + $0x8] sm:$0xff] %vm42, %v115
    // Predicated region
    $region26: #{tpu_custom_call.1} parent=1 // pred_check
      %p118 = pneg %p21
    $region27: #{tpu_custom_call.1} parent=1 // pred_check_branch
      %120 = sbr.rel (%p118) target = $region29
    $region28: #{tpu_custom_call.1} parent=1 // pred_region
      %v121 = vld [vmem:[#allocation2] sm:$0xff]
      %v122 = vld [vmem:[#allocation2 + $0x8] sm:$0xff]
      %123 = vst.msk [vmem:[#allocation3] sm:$0xff] %vm42, %v121
      %124 = vst.msk [vmem:[#allocation3 + $0x8] sm:$0xff] %vm42, %v122
    $region29: #{tpu_custom_call.1} parent=1 // pred_fallthru
      _
    // Predicated region
    $region30: #{tpu_custom_call.1} parent=1 // pred_check
      _
    $region31: #{tpu_custom_call.1} parent=1 // pred_check_branch
      %126 = sbr.rel (0) target = $region33
    $region32: #{tpu_custom_call.1} parent=1 // pred_region
      %128 = vsyncadd [#allocation4], 0
      %s129 = sshll.u32 [#allocation3], 4
      %s130 = int_to_ptr.vmem [resolvable:$true] %s129
      %s131 = sshll.u32 %s5, 4
      %s132 = int_to_ptr.hbm [resolvable:$true] %s131
      %137 = dma.vmem_to_hbm [thread:$0]  %s130, 256, %s132, [#allocation4], 128, 128, 8
    $region33: #{tpu_custom_call.1} parent=1 // pred_fallthru
      _
    // Predicated region
    $region34: #{tpu_custom_call.1} parent=1 // pred_check
      _
    $region35: #{tpu_custom_call.1} parent=1 // pred_check_branch
      %139 = sbr.rel (0) target = $region37
    $region36: #{tpu_custom_call.1} parent=1 // pred_region
      %141 = dma.done [#allocation4], 256
    $region37: #{tpu_custom_call.1} parent=1 // pred_fallthru
      _
    %142 = vsyncpa [#allocation4], 1

</llo_original>
